<compile_context>
chip_gen: v7x
topology: tpu7x:2x2x1
jax: 0.10.0
libtpu: 0.0.40
codegen_flags: <defaults>
</compile_context>

<pallas_src>
import functools

import jax
import jax.numpy as jnp
from jax.experimental import pallas as pl
from jax.experimental.pallas import tpu as pltpu


PAD = 128      # lane-dense feature padding (all feature dims <= 60 < 128)
N_LAYERS = 7   # mod0, mod1, mod2(gamma|beta), main0(+beta rows), main1, main2*head0, head1


def _round_up(x, m):
    return ((x + m - 1) // m) * m


# ----------------------------------------------------------------------------
# Parameter construction
# ----------------------------------------------------------------------------
def init_mlp_params(key, layer_sizes):
    """Deterministic Glorot-ish init; weights stored as (in, out)."""
    params = []
    for fin, fout in zip(layer_sizes[:-1], layer_sizes[1:]):
        key, kw, kb = jax.random.split(key, 3)
        w = jax.random.normal(kw, (fin, fout), jnp.float32) / jnp.sqrt(float(fin))
        b = 0.01 * jax.random.normal(kb, (fout,), jnp.float32)
        params.append((w, b))
    return params, key


def _pad_weight(w):
    out = jnp.zeros((PAD, PAD), jnp.float32)
    return out.at[: w.shape[0], : w.shape[1]].set(w)


def _pad_bias(b):
    out = jnp.zeros((1, PAD), jnp.float32)
    return out.at[0, : b.shape[0]].set(b)


def build_assembly_params(modulator_params, main_params, head_params, signal_dim):
    """Pad / restructure all weights to (128,128) bf16 tiles and (1,128) f32 biases.

    Restructuring applied at init time (all zero-cost for the kernel):
      * modulator layer-0 rows are shifted to the condition lanes [d, d+cond_dim)
        of the packed input slab,
      * main layer-0 rows are duplicated at [d, 2d) so the FiLM beta lanes feed the
        same matmul (kernel select trick),
      * main layer-2 (linear) is folded into head layer-0 (ReLU follows the fold).
    """
    (wm0, bm0), (wm1, bm1), (wm2, bm2) = modulator_params
    (wa0, ba0), (wa1, ba1), (wa2, ba2) = main_params
    (wh0, bh0), (wh1, bh1) = head_params
    cond_dim = wm0.shape[0]

    # L0: modulator layer 0, rows at the condition lane offset of the packed slab.
    w0 = jnp.zeros((PAD, PAD), jnp.float32).at[
        signal_dim:signal_dim + cond_dim, : wm0.shape[1]].set(wm0)

    # L3: main layer 0 with rows duplicated at [d, 2d) for the beta contribution.
    w3 = jnp.zeros((PAD, PAD), jnp.float32)
    w3 = w3.at[:signal_dim, : wa0.shape[1]].set(wa0)
    w3 = w3.at[signal_dim:2 * signal_dim, : wa0.shape[1]].set(wa0)

    # L5: fold main layer 2 (no activation) into head layer 0.
    w5 = wa2 @ wh0
    b5 = ba2 @ wh0 + bh0

    Ws = [w0, _pad_weight(wm1), _pad_weight(wm2), w3,
          _pad_weight(wa1), _pad_weight(w5), _pad_weight(wh1)]
    Bs = [bm0, bm1, bm2, ba0, ba1, b5, bh1]
    assert len(Ws) == len(Bs) == N_LAYERS
    W = jnp.stack(Ws).astype(jnp.bfloat16)      # (7, 128, 128) bf16 — native MXU dtype
    B = jnp.stack([_pad_bias(b) for b in Bs])   # (7, 1, 128)   f32  — elementwise stays f32
    return W, B


# ----------------------------------------------------------------------------
# Fused Pallas kernel: whole Assembly forward for one batch block
# ----------------------------------------------------------------------------
def _assembly_kernel(x_ref, w_ref, b_ref, o_ref, *, signal_dim):
    def lin(x, i, relu):
        # bf16 x bf16 MXU pass, f32 accumulation; bias add / ReLU in f32.
        y = jnp.dot(x.astype(jnp.bfloat16), w_ref[i],
                    preferred_element_type=jnp.float32) + b_ref[i]
        return jnp.maximum(y, 0.0) if relu else y

    # Packed input slab: signal in lanes [0, d), condition in lanes [d, d+cond_dim).
    x = x_ref[...]

    # FiLM modulator MLP (condition lanes only; W0 rows for signal lanes are zero).
    h = lin(x, 0, True)
    h = lin(h, 1, True)
    gb = lin(h, 2, False)          # gamma in lanes [0,d), beta in lanes [d,2d), zeros elsewhere

    # FiLM: lanes [0,d) -> signal*gamma, lanes [d,...) -> gb (== beta on [d,2d), 0 above).
    # The beta lanes feed the duplicated rows of the main-layer-0 weight, so
    # dot(u, W3) == (signal*gamma + beta) @ main0_weight.  Pure VPU work, no extra MXU pass.
    lane = jax.lax.broadcasted_iota(jnp.int32, gb.shape, 1)
    u = jnp.where(lane < signal_dim, x * gb, gb)

    # Main MLP (8 -> 32 -> 32) then folded (main2 ∘ head0) and head1.
    h = lin(u, 3, True)
    h = lin(h, 4, True)
    h = lin(h, 5, True)            # (32 -> 20): main2 folded into head0, ReLU from head0
    h = lin(h, 6, False)           # (20 -> 4)

    o_ref[...] = h.astype(o_ref.dtype)


def assembly_forward(W, Bv, signal, condition, *, signal_dim, out_dim):
    """Fused Assembly forward. signal: (B, d_sig), condition: (B, d_cond)."""
    Bn = signal.shape[0]
    d_in = signal.shape[1] + condition.shape[1]

    # Large batches: 512-1024-row tiles, and at least 2 grid steps so the "parallel"
    # axis shards across both TensorCores on v7x.  Tiny batches: one 8-row block.
    block_b = max(8, min(1024, _round_up(-(-Bn // 2), 8)))
    Bp = _round_up(Bn, block_b)

    # Single packed, lane-dense slab (signal lanes [0,d), condition lanes [d,d+dc)).
    packed = jnp.concatenate([signal, condition], axis=-1)
    x = jnp.pad(packed, ((0, Bp - Bn), (0, PAD - d_in)))

    out = pl.pallas_call(
        functools.partial(_assembly_kernel, signal_dim=signal_dim),
        out_shape=jax.ShapeDtypeStruct((Bp, PAD), jnp.float32),
        grid_spec=pltpu.PrefetchScalarGridSpec(
            num_scalar_prefetch=0,
            grid=(Bp // block_b,),
            in_specs=[
                pl.BlockSpec((block_b, PAD), lambda i: (i, 0)),            # packed activations
                pl.BlockSpec((N_LAYERS, PAD, PAD), lambda i: (0, 0, 0)),   # weights (resident)
                pl.BlockSpec((N_LAYERS, 1, PAD), lambda i: (0, 0, 0)),     # biases  (resident)
            ],
            out_specs=pl.BlockSpec((block_b, PAD), lambda i: (i, 0)),
        ),
        compiler_params=pltpu.CompilerParams(
            dimension_semantics=("parallel",),
        ),
    )(x, W, Bv)
    return out[:Bn, :out_dim]


# ----------------------------------------------------------------------------
# Pure-JAX f32 reference (semantic check)
# ----------------------------------------------------------------------------
def _ref_mlp(params, x):
    n = len(params)
    for i, (w, b) in enumerate(params):
        x = x @ w + b
        if i < n - 1:
            x = jnp.maximum(x, 0.0)
    return x


def reference_forward(modulator_params, main_params, head_params, signal, condition):
    gb = _ref_mlp(modulator_params, condition)
    d = signal.shape[-1]
    gamma, beta = gb[:, :d], gb[:, d:2 * d]
    s = signal * gamma + beta
    s = _ref_mlp(main_params, s)
    s = _ref_mlp(head_params, s)
    return s


# ----------------------------------------------------------------------------
# Build a deterministic Assembly and run it
# ----------------------------------------------------------------------------
if __name__ == "__main__":
    BATCH = 2
    SIGNAL_DIM = 8
    COND_DIM = 16
    OUT_DIM = 4

    key = jax.random.PRNGKey(0)

    # Component 0: FiLM — modulator MLP (16, 60, 60, 2*8) + main-block MLP (8, 32, 32, 10)
    modulator_params, key = init_mlp_params(key, (COND_DIM, 60, 60, 2 * SIGNAL_DIM))
    main_params, key = init_mlp_params(key, (SIGNAL_DIM, 32, 32, 10))
    # Component 1: MLP (10, 20, 4)
    head_params, key = init_mlp_params(key, (10, 20, 4))

    W, Bv = build_assembly_params(modulator_params, main_params, head_params, SIGNAL_DIM)

    k_sig, k_cond = jax.random.split(jax.random.PRNGKey(0))
    signal = jax.random.normal(k_sig, (BATCH, SIGNAL_DIM), jnp.float32)
    condition = jax.random.normal(k_cond, (BATCH, COND_DIM), jnp.float32)

    fwd = jax.jit(functools.partial(assembly_forward, W, Bv,
                                    signal_dim=SIGNAL_DIM, out_dim=OUT_DIM))
    out = fwd(signal, condition)
    jax.block_until_ready(out)
    assert out.shape == (BATCH, OUT_DIM), out.shape

    ref = reference_forward(modulator_params, main_params, head_params, signal, condition)
    # bf16 weights vs f32 reference -> loosened tolerance (per review).
    max_err = jnp.max(jnp.abs(out - ref))
    assert jnp.allclose(out, ref, rtol=5e-2, atol=5e-2), (out, ref, max_err)

    print("KERNEL_OK")
</pallas_src>

<mosaic_0001>
module attributes {stable_mosaic.version = 11 : i64} {
  func.func @_assembly_kernel(%arg0: i32, %arg1: memref<8x128xf32, #tpu.memory_space<vmem>>, %arg2: memref<7x128x128xbf16, #tpu.memory_space<vmem>>, %arg3: memref<7x1x128xf32, #tpu.memory_space<vmem>>, %arg4: memref<8x128xf32, #tpu.memory_space<vmem>>) attributes {dimension_semantics = [#tpu.dimension_semantics<parallel>], iteration_bounds = array<i64: 1>, scalar_prefetch = 0 : i64, scratch_operands = 0 : i64, tpu.core_type = #tpu.core_type<tc>, window_params = [{transform_indices = @transform_0, window_bounds = array<i64: 8, 128>}, {pipeline_mode = #tpu.pipeline_mode<synchronous>, transform_indices = @transform_1, window_bounds = array<i64: 7, 128, 128>}, {pipeline_mode = #tpu.pipeline_mode<synchronous>, transform_indices = @transform_2, window_bounds = array<i64: 7, 1, 128>}, {transform_indices = @transform_3, window_bounds = array<i64: 8, 128>}]} {
    %c0 = arith.constant 0 : index
    %c0_0 = arith.constant 0 : index
    %0 = vector.load %arg1[%c0, %c0_0] : memref<8x128xf32, #tpu.memory_space<vmem>>, vector<8x128xf32>
    %1 = arith.truncf %0 : vector<8x128xf32> to vector<8x128xbf16>
    %c0_1 = arith.constant 0 : index
    %c0_2 = arith.constant 0 : index
    %c0_3 = arith.constant 0 : index
    %2 = vector.load %arg2[%c0_1, %c0_2, %c0_3] : memref<7x128x128xbf16, #tpu.memory_space<vmem>>, vector<1x128x128xbf16>
    %3 = vector.shape_cast %2 : vector<1x128x128xbf16> to vector<128x128xbf16>
    %cst = arith.constant dense<0.000000e+00> : vector<8x128xf32>
    %4 = tpu.matmul %1, %3, %cst {dimension_numbers = #tpu.dot_dimension_numbers<[1], [0], [0], [1], [0, 0, 1, 1], [], []>} : vector<8x128xbf16>, vector<128x128xbf16>, vector<8x128xf32> -> vector<8x128xf32>
    %c0_4 = arith.constant 0 : index
    %c0_5 = arith.constant 0 : index
    %c0_6 = arith.constant 0 : index
    %5 = vector.load %arg3[%c0_4, %c0_5, %c0_6] : memref<7x1x128xf32, #tpu.memory_space<vmem>>, vector<1x1x128xf32>
    %6 = vector.shape_cast %5 : vector<1x1x128xf32> to vector<1x128xf32>
    %7 = vector.broadcast %6 : vector<1x128xf32> to vector<8x128xf32>
    %8 = arith.addf %4, %7 : vector<8x128xf32>
    %cst_7 = arith.constant 0.000000e+00 : f32
    %9 = vector.broadcast %cst_7 : f32 to vector<8x128xf32>
    %10 = arith.maximumf %8, %9 : vector<8x128xf32>
    %11 = arith.truncf %10 : vector<8x128xf32> to vector<8x128xbf16>
    %c1 = arith.constant 1 : index
    %c0_8 = arith.constant 0 : index
    %c0_9 = arith.constant 0 : index
    %12 = vector.load %arg2[%c1, %c0_8, %c0_9] : memref<7x128x128xbf16, #tpu.memory_space<vmem>>, vector<1x128x128xbf16>
    %13 = vector.shape_cast %12 : vector<1x128x128xbf16> to vector<128x128xbf16>
    %cst_10 = arith.constant dense<0.000000e+00> : vector<8x128xf32>
    %14 = tpu.matmul %11, %13, %cst_10 {dimension_numbers = #tpu.dot_dimension_numbers<[1], [0], [0], [1], [0, 0, 1, 1], [], []>} : vector<8x128xbf16>, vector<128x128xbf16>, vector<8x128xf32> -> vector<8x128xf32>
    %c1_11 = arith.constant 1 : index
    %c0_12 = arith.constant 0 : index
    %c0_13 = arith.constant 0 : index
    %15 = vector.load %arg3[%c1_11, %c0_12, %c0_13] : memref<7x1x128xf32, #tpu.memory_space<vmem>>, vector<1x1x128xf32>
    %16 = vector.shape_cast %15 : vector<1x1x128xf32> to vector<1x128xf32>
    %17 = vector.broadcast %16 : vector<1x128xf32> to vector<8x128xf32>
    %18 = arith.addf %14, %17 : vector<8x128xf32>
    %cst_14 = arith.constant 0.000000e+00 : f32
    %19 = vector.broadcast %cst_14 : f32 to vector<8x128xf32>
    %20 = arith.maximumf %18, %19 : vector<8x128xf32>
    %21 = arith.truncf %20 : vector<8x128xf32> to vector<8x128xbf16>
    %c2 = arith.constant 2 : index
    %c0_15 = arith.constant 0 : index
    %c0_16 = arith.constant 0 : index
    %22 = vector.load %arg2[%c2, %c0_15, %c0_16] : memref<7x128x128xbf16, #tpu.memory_space<vmem>>, vector<1x128x128xbf16>
    %23 = vector.shape_cast %22 : vector<1x128x128xbf16> to vector<128x128xbf16>
    %cst_17 = arith.constant dense<0.000000e+00> : vector<8x128xf32>
    %24 = tpu.matmul %21, %23, %cst_17 {dimension_numbers = #tpu.dot_dimension_numbers<[1], [0], [0], [1], [0, 0, 1, 1], [], []>} : vector<8x128xbf16>, vector<128x128xbf16>, vector<8x128xf32> -> vector<8x128xf32>
    %c2_18 = arith.constant 2 : index
    %c0_19 = arith.constant 0 : index
    %c0_20 = arith.constant 0 : index
    %25 = vector.load %arg3[%c2_18, %c0_19, %c0_20] : memref<7x1x128xf32, #tpu.memory_space<vmem>>, vector<1x1x128xf32>
    %26 = vector.shape_cast %25 : vector<1x1x128xf32> to vector<1x128xf32>
    %27 = vector.broadcast %26 : vector<1x128xf32> to vector<8x128xf32>
    %28 = arith.addf %24, %27 : vector<8x128xf32>
    %29 = tpu.iota {dimensions = array<i32: 1>} : vector<8x128xi32>
    %c8_i32 = arith.constant 8 : i32
    %30 = vector.broadcast %c8_i32 : i32 to vector<8x128xi32>
    %31 = arith.cmpi slt, %29, %30 : vector<8x128xi32>
    %32 = arith.mulf %0, %28 : vector<8x128xf32>
    %33 = arith.select %31, %32, %28 : vector<8x128xi1>, vector<8x128xf32>
    %34 = arith.truncf %33 : vector<8x128xf32> to vector<8x128xbf16>
    %c3 = arith.constant 3 : index
    %c0_21 = arith.constant 0 : index
    %c0_22 = arith.constant 0 : index
    %35 = vector.load %arg2[%c3, %c0_21, %c0_22] : memref<7x128x128xbf16, #tpu.memory_space<vmem>>, vector<1x128x128xbf16>
    %36 = vector.shape_cast %35 : vector<1x128x128xbf16> to vector<128x128xbf16>
    %cst_23 = arith.constant dense<0.000000e+00> : vector<8x128xf32>
    %37 = tpu.matmul %34, %36, %cst_23 {dimension_numbers = #tpu.dot_dimension_numbers<[1], [0], [0], [1], [0, 0, 1, 1], [], []>} : vector<8x128xbf16>, vector<128x128xbf16>, vector<8x128xf32> -> vector<8x128xf32>
    %c3_24 = arith.constant 3 : index
    %c0_25 = arith.constant 0 : index
    %c0_26 = arith.constant 0 : index
    %38 = vector.load %arg3[%c3_24, %c0_25, %c0_26] : memref<7x1x128xf32, #tpu.memory_space<vmem>>, vector<1x1x128xf32>
    %39 = vector.shape_cast %38 : vector<1x1x128xf32> to vector<1x128xf32>
    %40 = vector.broadcast %39 : vector<1x128xf32> to vector<8x128xf32>
    %41 = arith.addf %37, %40 : vector<8x128xf32>
    %cst_27 = arith.constant 0.000000e+00 : f32
    %42 = vector.broadcast %cst_27 : f32 to vector<8x128xf32>
    %43 = arith.maximumf %41, %42 : vector<8x128xf32>
    %44 = arith.truncf %43 : vector<8x128xf32> to vector<8x128xbf16>
    %c4 = arith.constant 4 : index
    %c0_28 = arith.constant 0 : index
    %c0_29 = arith.constant 0 : index
    %45 = vector.load %arg2[%c4, %c0_28, %c0_29] : memref<7x128x128xbf16, #tpu.memory_space<vmem>>, vector<1x128x128xbf16>
    %46 = vector.shape_cast %45 : vector<1x128x128xbf16> to vector<128x128xbf16>
    %cst_30 = arith.constant dense<0.000000e+00> : vector<8x128xf32>
    %47 = tpu.matmul %44, %46, %cst_30 {dimension_numbers = #tpu.dot_dimension_numbers<[1], [0], [0], [1], [0, 0, 1, 1], [], []>} : vector<8x128xbf16>, vector<128x128xbf16>, vector<8x128xf32> -> vector<8x128xf32>
    %c4_31 = arith.constant 4 : index
    %c0_32 = arith.constant 0 : index
    %c0_33 = arith.constant 0 : index
    %48 = vector.load %arg3[%c4_31, %c0_32, %c0_33] : memref<7x1x128xf32, #tpu.memory_space<vmem>>, vector<1x1x128xf32>
    %49 = vector.shape_cast %48 : vector<1x1x128xf32> to vector<1x128xf32>
    %50 = vector.broadcast %49 : vector<1x128xf32> to vector<8x128xf32>
    %51 = arith.addf %47, %50 : vector<8x128xf32>
    %cst_34 = arith.constant 0.000000e+00 : f32
    %52 = vector.broadcast %cst_34 : f32 to vector<8x128xf32>
    %53 = arith.maximumf %51, %52 : vector<8x128xf32>
    %54 = arith.truncf %53 : vector<8x128xf32> to vector<8x128xbf16>
    %c5 = arith.constant 5 : index
    %c0_35 = arith.constant 0 : index
    %c0_36 = arith.constant 0 : index
    %55 = vector.load %arg2[%c5, %c0_35, %c0_36] : memref<7x128x128xbf16, #tpu.memory_space<vmem>>, vector<1x128x128xbf16>
    %56 = vector.shape_cast %55 : vector<1x128x128xbf16> to vector<128x128xbf16>
    %cst_37 = arith.constant dense<0.000000e+00> : vector<8x128xf32>
    %57 = tpu.matmul %54, %56, %cst_37 {dimension_numbers = #tpu.dot_dimension_numbers<[1], [0], [0], [1], [0, 0, 1, 1], [], []>} : vector<8x128xbf16>, vector<128x128xbf16>, vector<8x128xf32> -> vector<8x128xf32>
    %c5_38 = arith.constant 5 : index
    %c0_39 = arith.constant 0 : index
    %c0_40 = arith.constant 0 : index
    %58 = vector.load %arg3[%c5_38, %c0_39, %c0_40] : memref<7x1x128xf32, #tpu.memory_space<vmem>>, vector<1x1x128xf32>
    %59 = vector.shape_cast %58 : vector<1x1x128xf32> to vector<1x128xf32>
    %60 = vector.broadcast %59 : vector<1x128xf32> to vector<8x128xf32>
    %61 = arith.addf %57, %60 : vector<8x128xf32>
    %cst_41 = arith.constant 0.000000e+00 : f32
    %62 = vector.broadcast %cst_41 : f32 to vector<8x128xf32>
    %63 = arith.maximumf %61, %62 : vector<8x128xf32>
    %64 = arith.truncf %63 : vector<8x128xf32> to vector<8x128xbf16>
    %c6 = arith.constant 6 : index
    %c0_42 = arith.constant 0 : index
    %c0_43 = arith.constant 0 : index
    %65 = vector.load %arg2[%c6, %c0_42, %c0_43] : memref<7x128x128xbf16, #tpu.memory_space<vmem>>, vector<1x128x128xbf16>
    %66 = vector.shape_cast %65 : vector<1x128x128xbf16> to vector<128x128xbf16>
    %cst_44 = arith.constant dense<0.000000e+00> : vector<8x128xf32>
    %67 = tpu.matmul %64, %66, %cst_44 {dimension_numbers = #tpu.dot_dimension_numbers<[1], [0], [0], [1], [0, 0, 1, 1], [], []>} : vector<8x128xbf16>, vector<128x128xbf16>, vector<8x128xf32> -> vector<8x128xf32>
    %c6_45 = arith.constant 6 : index
    %c0_46 = arith.constant 0 : index
    %c0_47 = arith.constant 0 : index
    %68 = vector.load %arg3[%c6_45, %c0_46, %c0_47] : memref<7x1x128xf32, #tpu.memory_space<vmem>>, vector<1x1x128xf32>
    %69 = vector.shape_cast %68 : vector<1x1x128xf32> to vector<1x128xf32>
    %70 = vector.broadcast %69 : vector<1x128xf32> to vector<8x128xf32>
    %71 = arith.addf %67, %70 : vector<8x128xf32>
    %c0_48 = arith.constant 0 : index
    %c0_49 = arith.constant 0 : index
    %72 = vector.load %arg4[%c0_48, %c0_49] : memref<8x128xf32, #tpu.memory_space<vmem>>, vector<8x128xf32>
    tpu.vector_store %arg4[%c0_48, %c0_49], %71 {strides = array<i32>} : memref<8x128xf32, #tpu.memory_space<vmem>>, vector<8x128xf32>,
    return
  }
  func.func @transform_0(%arg0: i32) -> (i32, i32) {
    %c0_i32 = arith.constant 0 : i32
    %c0_i32_0 = arith.constant 0 : i32
    return %arg0, %c0_i32 : i32, i32
  }
  func.func @transform_1(%arg0: i32) -> (i32, i32, i32) {
    %c0_i32 = arith.constant 0 : i32
    %c0_i32_0 = arith.constant 0 : i32
    %c0_i32_1 = arith.constant 0 : i32
    %c0_i32_2 = arith.constant 0 : i32
    return %c0_i32, %c0_i32_0, %c0_i32_1 : i32, i32, i32
  }
  func.func @transform_2(%arg0: i32) -> (i32, i32, i32) {
    %c0_i32 = arith.constant 0 : i32
    %c0_i32_0 = arith.constant 0 : i32
    %c0_i32_1 = arith.constant 0 : i32
    %c0_i32_2 = arith.constant 0 : i32
    return %c0_i32, %c0_i32_0, %c0_i32_1 : i32, i32, i32
  }
  func.func @transform_3(%arg0: i32) -> (i32, i32) {
    %c0_i32 = arith.constant 0 : i32
    %c0_i32_0 = arith.constant 0 : i32
    return %arg0, %c0_i32 : i32, i32
  }
}

</mosaic_0001>

<llo_original>
// kernel: assembly_forward.1
$region0: #{assembly_forward.1}
  #allocation0 [shape = 'u32[]', space=smem, size = 0x4, offset = 0x4, fixed_abs, tag = 'smem constant byte address 0x4 - core index']
  #allocation1 [shape = 'u32[144,128]{1,0:T(1,128)}', space=vmem, size = 0x12000, scoped, tag = 'internal scratch']
  %s0 = inlined_call_operand.vmem [shape: f32[8,128], index: 0, kind: input, shape index: {}]
  %s1 = inlined_call_operand.hbm [shape: bf16[7,128,128], index: 1, kind: input, shape index: {}]
  %s2 = inlined_call_operand.vmem [shape: f32[7,1,128], index: 2, kind: input, shape index: {}]
  %s3 = inlined_call_operand.vmem [shape: f32[8,128], index: 3, kind: output, shape index: {}]
  %s4 = sld [smem:[#allocation0]]
  $region26: #{assembly_forward.1} parent=0
    _
  %s6 = ssub.s32 1, %s4
  %s7 = scalar_select 0, %s6, %s4
  $region1: #{assembly_forward.1} parent=0
    #allocation2 [shape = 'u8[229376]{0}', space=vmem, size = 0x38000, scoped, tag = 'input window, operand 1, single buffered']
    #allocation3 [shape = 's32[1]{0}', space=sflag, size = 0x4, scoped, tag = 'scoped memory for assembly_forward.1']
    %8 = vsyncpa [#allocation3], 0
    // Predicated region
    $region2: #{assembly_forward.1} parent=1 // pred_check
      _
    $region3: #{assembly_forward.1} parent=1 // pred_check_branch
      %10 = sbr.rel (0) target = $region5
    $region4: #{assembly_forward.1} parent=1 // pred_region
      _
    $region5: #{assembly_forward.1} parent=1 // pred_fallthru
      _
    // Predicated region
    $region6: #{assembly_forward.1} parent=1 // pred_check
      _
    $region7: #{assembly_forward.1} parent=1 // pred_check_branch
      %12 = sbr.rel (0) target = $region9
    $region8: #{assembly_forward.1} parent=1 // pred_region
      %s14 = ssub.s32 7168, 7168
      %15 = vsyncadd [#allocation3], %s14
      %s16 = sshll.u32 [#allocation2], 4
      %s17 = int_to_ptr.vmem [resolvable:$true] %s16
      %22 = dma.hbm_to_vmem [thread:$0]  %s1, 7168, %s17, [#allocation3], 64, 64, 4
    $region9: #{assembly_forward.1} parent=1 // pred_fallthru
      _
    // Predicated region
    $region10: #{assembly_forward.1} parent=1 // pred_check
      _
    $region11: #{assembly_forward.1} parent=1 // pred_check_branch
      %24 = sbr.rel (0) target = $region13
    $region12: #{assembly_forward.1} parent=1 // pred_region
      _
    $region13: #{assembly_forward.1} parent=1 // pred_fallthru
      _
    // Predicated region
    $region14: #{assembly_forward.1} parent=1 // pred_check
      _
    $region15: #{assembly_forward.1} parent=1 // pred_check_branch
      %26 = sbr.rel (0) target = $region17
    $region16: #{assembly_forward.1} parent=1 // pred_region
      %27 = dma.done [#allocation3], 7168
    $region17: #{assembly_forward.1} parent=1 // pred_fallthru
      _
    %v29 = vld [vmem:[%s0] sm:$0xff]
    %v30 = vpack.c.bf16 %v29, %v29
    %v31 = vld [vmem:[#allocation2] sm:$0xf]
    %v32 = vld [vmem:[#allocation2 + $0x4] sm:$0xf]
    %v33 = vld [vmem:[#allocation2 + $0x8] sm:$0xf]
    %v34 = vld [vmem:[#allocation2 + $0xc] sm:$0xf]
    %v35 = vld [vmem:[#allocation2 + $0x10] sm:$0xf]
    %v36 = vld [vmem:[#allocation2 + $0x14] sm:$0xf]
    %v37 = vld [vmem:[#allocation2 + $0x18] sm:$0xf]
    %v38 = vld [vmem:[#allocation2 + $0x1c] sm:$0xf]
    %v39 = vld [vmem:[#allocation2 + $0x20] sm:$0xf]
    %v40 = vld [vmem:[#allocation2 + $0x24] sm:$0xf]
    %v41 = vld [vmem:[#allocation2 + $0x28] sm:$0xf]
    %v42 = vld [vmem:[#allocation2 + $0x2c] sm:$0xf]
    %v43 = vld [vmem:[#allocation2 + $0x30] sm:$0xf]
    %v44 = vld [vmem:[#allocation2 + $0x34] sm:$0xf]
    %v45 = vld [vmem:[#allocation2 + $0x38] sm:$0xf]
    %v46 = vld [vmem:[#allocation2 + $0x3c] sm:$0xf]
    %v47 = vld [vmem:[%s2] sm:$0x1]
    %v49 = vlaneseq
    %v50 = vshrl.u32 %v49, 7
    %v51 = vsub.s32 0, %v50
    %v52 = vrot.slane %v47, %v51
    %v70 = vunpack.c.l.b16 %v31
    %v71 = vunpack.c.l.b16 %v32
    %v72 = vunpack.c.l.b16 %v33
    %v73 = vunpack.c.l.b16 %v34
    %v74 = vunpack.c.l.b16 %v35
    %v75 = vunpack.c.l.b16 %v36
    %v76 = vunpack.c.l.b16 %v37
    %v77 = vunpack.c.l.b16 %v38
    %v78 = vunpack.c.l.b16 %v39
    %v79 = vunpack.c.l.b16 %v40
    %v80 = vunpack.c.l.b16 %v41
    %v81 = vunpack.c.l.b16 %v42
    %v82 = vunpack.c.l.b16 %v43
    %v83 = vunpack.c.l.b16 %v44
    %v84 = vunpack.c.l.b16 %v45
    %v85 = vunpack.c.l.b16 %v46
    %v86 = vpack.c.b16 %v71, %v70
    %v87 = vpack.c.b16 %v73, %v72
    %v88 = vpack.c.b16 %v75, %v74
    %v89 = vpack.c.b16 %v77, %v76
    %v90 = vpack.c.b16 %v79, %v78
    %v91 = vpack.c.b16 %v81, %v80
    %v92 = vpack.c.b16 %v83, %v82
    %v93 = vpack.c.b16 %v85, %v84
    %102 = vmatprep.subr.bf16.mxu0 0
    %103 = vmatpush1.bf16.msra.mxu0 %v86
    %104 = vmatprep.subr.bf16.mxu0 0
    %105 = vmatpush1.bf16.msra.mxu0 %v87
    %106 = vmatprep.subr.bf16.mxu0 0
    %107 = vmatpush1.bf16.msra.mxu0 %v88
    %108 = vmatprep.subr.bf16.mxu0 0
    %109 = vmatpush1.bf16.msra.mxu0 %v89
    %110 = vmatprep.subr.bf16.mxu0 0
    %111 = vmatpush1.bf16.msra.mxu0 %v90
    %112 = vmatprep.subr.bf16.mxu0 0
    %113 = vmatpush1.bf16.msra.mxu0 %v91
    %114 = vmatprep.subr.bf16.mxu0 0
    %115 = vmatpush1.bf16.msra.mxu0 %v92
    %116 = vmatprep.subr.bf16.mxu0 0
    %117 = vmatpush1.bf16.msra.mxu0 %v93
    %118 = vmatprep.subr.bf16.mxu0 0
    %119 = vmatpush1.bf16.msra.mxu0 0
    %120 = vmatprep.subr.bf16.mxu0 0
    %121 = vmatpush1.bf16.msra.mxu0 0
    %122 = vmatprep.subr.bf16.mxu0 0
    %123 = vmatpush1.bf16.msra.mxu0 0
    %124 = vmatprep.subr.bf16.mxu0 0
    %125 = vmatpush1.bf16.msra.mxu0 0
    %126 = vmatprep.subr.bf16.mxu0 0
    %127 = vmatpush1.bf16.msra.mxu0 0
    %128 = vmatprep.subr.bf16.mxu0 0
    %129 = vmatpush1.bf16.msra.mxu0 0
    %130 = vmatprep.subr.bf16.mxu0 0
    %131 = vmatpush1.bf16.msra.mxu0 0
    %132 = vmatprep.subr.bf16.mxu0 0
    %133 = vmatpush1.bf16.msra.mxu0 0
    %134 = vmatprep.mubr.bf16.mxu0 0
    %135 = vmatmul.mubr.bf16.gmra.mrb[0].mxu0 %v30
    %v136 = vpop.f32.mrb[0].mxu0
    %v137 = vadd.f32 %v52, %v136
    %v138 = vpop.f32.mrb[0].mxu0
    %v139 = vpop.f32.mrb[0].mxu0
    %v140 = vpop.f32.mrb[0].mxu0
    %141 = vdwg.mxu0
    %v142 = vmax.f32 %v137, 0.0
    %v143 = vpack.c.bf16 %v142, %v142
    %s144 = scalar_lea.vmem [#allocation2], 64
    %v145 = vld [vmem:[%s144] sm:$0xf]
    %v146 = vld [vmem:[%s144 + $0x4] sm:$0xf]
    %v147 = vld [vmem:[%s144 + $0x8] sm:$0xf]
    %v148 = vld [vmem:[%s144 + $0xc] sm:$0xf]
    %v149 = vld [vmem:[%s144 + $0x10] sm:$0xf]
    %v150 = vld [vmem:[%s144 + $0x14] sm:$0xf]
    %v151 = vld [vmem:[%s144 + $0x18] sm:$0xf]
    %v152 = vld [vmem:[%s144 + $0x1c] sm:$0xf]
    %v153 = vld [vmem:[%s144 + $0x20] sm:$0xf]
    %v154 = vld [vmem:[%s144 + $0x24] sm:$0xf]
    %v155 = vld [vmem:[%s144 + $0x28] sm:$0xf]
    %v156 = vld [vmem:[%s144 + $0x2c] sm:$0xf]
    %v157 = vld [vmem:[%s144 + $0x30] sm:$0xf]
    %v158 = vld [vmem:[%s144 + $0x34] sm:$0xf]
    %v159 = vld [vmem:[%s144 + $0x38] sm:$0xf]
    %v160 = vld [vmem:[%s144 + $0x3c] sm:$0xf]
    %s161 = scalar_lea.vmem %s2, 1
    %v162 = vld [vmem:[%s161] sm:$0x1]
    %v164 = vlaneseq
    %v165 = vshrl.u32 %v164, 7
    %v166 = vsub.s32 0, %v165
    %v167 = vrot.slane %v162, %v166
    %v185 = vunpack.c.l.b16 %v145
    %v186 = vunpack.c.l.b16 %v146
    %v187 = vunpack.c.l.b16 %v147
    %v188 = vunpack.c.l.b16 %v148
    %v189 = vunpack.c.l.b16 %v149
    %v190 = vunpack.c.l.b16 %v150
    %v191 = vunpack.c.l.b16 %v151
    %v192 = vunpack.c.l.b16 %v152
    %v193 = vunpack.c.l.b16 %v153
    %v194 = vunpack.c.l.b16 %v154
    %v195 = vunpack.c.l.b16 %v155
    %v196 = vunpack.c.l.b16 %v156
    %v197 = vunpack.c.l.b16 %v157
    %v198 = vunpack.c.l.b16 %v158
    %v199 = vunpack.c.l.b16 %v159
    %v200 = vunpack.c.l.b16 %v160
    %v201 = vpack.c.b16 %v186, %v185
    %v202 = vpack.c.b16 %v188, %v187
    %v203 = vpack.c.b16 %v190, %v189
    %v204 = vpack.c.b16 %v192, %v191
    %v205 = vpack.c.b16 %v194, %v193
    %v206 = vpack.c.b16 %v196, %v195
    %v207 = vpack.c.b16 %v198, %v197
    %v208 = vpack.c.b16 %v200, %v199
    %217 = vmatprep.subr.bf16.mxu0 0
    %218 = vmatpush1.bf16.msra.mxu0 %v201
    %219 = vmatprep.subr.bf16.mxu0 0
    %220 = vmatpush1.bf16.msra.mxu0 %v202
    %221 = vmatprep.subr.bf16.mxu0 0
    %222 = vmatpush1.bf16.msra.mxu0 %v203
    %223 = vmatprep.subr.bf16.mxu0 0
    %224 = vmatpush1.bf16.msra.mxu0 %v204
    %225 = vmatprep.subr.bf16.mxu0 0
    %226 = vmatpush1.bf16.msra.mxu0 %v205
    %227 = vmatprep.subr.bf16.mxu0 0
    %228 = vmatpush1.bf16.msra.mxu0 %v206
    %229 = vmatprep.subr.bf16.mxu0 0
    %230 = vmatpush1.bf16.msra.mxu0 %v207
    %231 = vmatprep.subr.bf16.mxu0 0
    %232 = vmatpush1.bf16.msra.mxu0 %v208
    %233 = vmatprep.subr.bf16.mxu0 0
    %234 = vmatpush1.bf16.msra.mxu0 0
    %235 = vmatprep.subr.bf16.mxu0 0
    %236 = vmatpush1.bf16.msra.mxu0 0
    %237 = vmatprep.subr.bf16.mxu0 0
    %238 = vmatpush1.bf16.msra.mxu0 0
    %239 = vmatprep.subr.bf16.mxu0 0
    %240 = vmatpush1.bf16.msra.mxu0 0
    %241 = vmatprep.subr.bf16.mxu0 0
    %242 = vmatpush1.bf16.msra.mxu0 0
    %243 = vmatprep.subr.bf16.mxu0 0
    %244 = vmatpush1.bf16.msra.mxu0 0
    %245 = vmatprep.subr.bf16.mxu0 0
    %246 = vmatpush1.bf16.msra.mxu0 0
    %247 = vmatprep.subr.bf16.mxu0 0
    %248 = vmatpush1.bf16.msra.mxu0 0
    %249 = vmatprep.mubr.bf16.mxu0 0
    %250 = vmatmul.mubr.bf16.gmra.mrb[0].mxu0 %v143
    %v251 = vpop.f32.mrb[0].mxu0
    %v252 = vadd.f32 %v167, %v251
    %v253 = vpop.f32.mrb[0].mxu0
    %v254 = vpop.f32.mrb[0].mxu0
    %v255 = vpop.f32.mrb[0].mxu0
    %256 = vdwg.mxu0
    %v257 = vmax.f32 %v252, 0.0
    %v258 = vpack.c.bf16 %v257, %v257
    %s259 = scalar_lea.vmem [#allocation2], 128
    %v260 = vld [vmem:[%s259] sm:$0xf]
    %v261 = vld [vmem:[%s259 + $0x4] sm:$0xf]
    %v262 = vld [vmem:[%s259 + $0x8] sm:$0xf]
    %v263 = vld [vmem:[%s259 + $0xc] sm:$0xf]
    %v264 = vld [vmem:[%s259 + $0x10] sm:$0xf]
    %v265 = vld [vmem:[%s259 + $0x14] sm:$0xf]
    %v266 = vld [vmem:[%s259 + $0x18] sm:$0xf]
    %v267 = vld [vmem:[%s259 + $0x1c] sm:$0xf]
    %v268 = vld [vmem:[%s259 + $0x20] sm:$0xf]
    %v269 = vld [vmem:[%s259 + $0x24] sm:$0xf]
    %v270 = vld [vmem:[%s259 + $0x28] sm:$0xf]
    %v271 = vld [vmem:[%s259 + $0x2c] sm:$0xf]
    %v272 = vld [vmem:[%s259 + $0x30] sm:$0xf]
    %v273 = vld [vmem:[%s259 + $0x34] sm:$0xf]
    %v274 = vld [vmem:[%s259 + $0x38] sm:$0xf]
    %v275 = vld [vmem:[%s259 + $0x3c] sm:$0xf]
    %s276 = scalar_lea.vmem %s2, 2
    %v277 = vld [vmem:[%s276] sm:$0x1]
    %v279 = vlaneseq
    %v280 = vshrl.u32 %v279, 7
    %v281 = vsub.s32 0, %v280
    %v282 = vrot.slane %v277, %v281
    %v300 = vunpack.c.l.b16 %v260
    %v301 = vunpack.c.l.b16 %v261
    %v302 = vunpack.c.l.b16 %v262
    %v303 = vunpack.c.l.b16 %v263
    %v304 = vunpack.c.l.b16 %v264
    %v305 = vunpack.c.l.b16 %v265
    %v306 = vunpack.c.l.b16 %v266
    %v307 = vunpack.c.l.b16 %v267
    %v308 = vunpack.c.l.b16 %v268
    %v309 = vunpack.c.l.b16 %v269
    %v310 = vunpack.c.l.b16 %v270
    %v311 = vunpack.c.l.b16 %v271
    %v312 = vunpack.c.l.b16 %v272
    %v313 = vunpack.c.l.b16 %v273
    %v314 = vunpack.c.l.b16 %v274
    %v315 = vunpack.c.l.b16 %v275
    %v316 = vpack.c.b16 %v301, %v300
    %v317 = vpack.c.b16 %v303, %v302
    %v318 = vpack.c.b16 %v305, %v304
    %v319 = vpack.c.b16 %v307, %v306
    %v320 = vpack.c.b16 %v309, %v308
    %v321 = vpack.c.b16 %v311, %v310
    %v322 = vpack.c.b16 %v313, %v312
    %v323 = vpack.c.b16 %v315, %v314
    %332 = vmatprep.subr.bf16.mxu0 0
    %333 = vmatpush1.bf16.msra.mxu0 %v316
    %334 = vmatprep.subr.bf16.mxu0 0
    %335 = vmatpush1.bf16.msra.mxu0 %v317
    %336 = vmatprep.subr.bf16.mxu0 0
    %337 = vmatpush1.bf16.msra.mxu0 %v318
    %338 = vmatprep.subr.bf16.mxu0 0
    %339 = vmatpush1.bf16.msra.mxu0 %v319
    %340 = vmatprep.subr.bf16.mxu0 0
    %341 = vmatpush1.bf16.msra.mxu0 %v320
    %342 = vmatprep.subr.bf16.mxu0 0
    %343 = vmatpush1.bf16.msra.mxu0 %v321
    %344 = vmatprep.subr.bf16.mxu0 0
    %345 = vmatpush1.bf16.msra.mxu0 %v322
    %346 = vmatprep.subr.bf16.mxu0 0
    %347 = vmatpush1.bf16.msra.mxu0 %v323
    %348 = vmatprep.subr.bf16.mxu0 0
    %349 = vmatpush1.bf16.msra.mxu0 0
    %350 = vmatprep.subr.bf16.mxu0 0
    %351 = vmatpush1.bf16.msra.mxu0 0
    %352 = vmatprep.subr.bf16.mxu0 0
    %353 = vmatpush1.bf16.msra.mxu0 0
    %354 = vmatprep.subr.bf16.mxu0 0
    %355 = vmatpush1.bf16.msra.mxu0 0
    %356 = vmatprep.subr.bf16.mxu0 0
    %357 = vmatpush1.bf16.msra.mxu0 0
    %358 = vmatprep.subr.bf16.mxu0 0
    %359 = vmatpush1.bf16.msra.mxu0 0
    %360 = vmatprep.subr.bf16.mxu0 0
    %361 = vmatpush1.bf16.msra.mxu0 0
    %362 = vmatprep.subr.bf16.mxu0 0
    %363 = vmatpush1.bf16.msra.mxu0 0
    %364 = vmatprep.mubr.bf16.mxu0 0
    %365 = vmatmul.mubr.bf16.gmra.mrb[0].mxu0 %v258
    %v366 = vpop.f32.mrb[0].mxu0
    %v367 = vadd.f32 %v282, %v366
    %v368 = vpop.f32.mrb[0].mxu0
    %v369 = vpop.f32.mrb[0].mxu0
    %v370 = vpop.f32.mrb[0].mxu0
    %371 = vdwg.mxu0
    %v372 = vlaneseq
    %v373 = vand.u32 %v372, 127
    %vm374 = vcmp.lt.s32.totalorder %v373, 8
    %v375 = vmul.f32 %v29, %v367
    %v376 = vsel %vm374, %v375, %v367
    %v377 = vpack.c.bf16 %v376, %v376
    %s378 = scalar_lea.vmem [#allocation2], 192
    %v379 = vld [vmem:[%s378] sm:$0xf]
    %v380 = vld [vmem:[%s378 + $0x4] sm:$0xf]
    %v381 = vld [vmem:[%s378 + $0x8] sm:$0xf]
    %v382 = vld [vmem:[%s378 + $0xc] sm:$0xf]
    %v383 = vld [vmem:[%s378 + $0x10] sm:$0xf]
    %v384 = vld [vmem:[%s378 + $0x14] sm:$0xf]
    %v385 = vld [vmem:[%s378 + $0x18] sm:$0xf]
    %v386 = vld [vmem:[%s378 + $0x1c] sm:$0xf]
    %v387 = vld [vmem:[%s378 + $0x20] sm:$0xf]
    %v388 = vld [vmem:[%s378 + $0x24] sm:$0xf]
    %v389 = vld [vmem:[%s378 + $0x28] sm:$0xf]
    %v390 = vld [vmem:[%s378 + $0x2c] sm:$0xf]
    %v391 = vld [vmem:[%s378 + $0x30] sm:$0xf]
    %v392 = vld [vmem:[%s378 + $0x34] sm:$0xf]
    %v393 = vld [vmem:[%s378 + $0x38] sm:$0xf]
    %v394 = vld [vmem:[%s378 + $0x3c] sm:$0xf]
    %s395 = scalar_lea.vmem %s2, 3
    %v396 = vld [vmem:[%s395] sm:$0x1]
    %v398 = vlaneseq
    %v399 = vshrl.u32 %v398, 7
    %v400 = vsub.s32 0, %v399
    %v401 = vrot.slane %v396, %v400
    %v419 = vunpack.c.l.b16 %v379
    %v420 = vunpack.c.l.b16 %v380
    %v421 = vunpack.c.l.b16 %v381
    %v422 = vunpack.c.l.b16 %v382
    %v423 = vunpack.c.l.b16 %v383
    %v424 = vunpack.c.l.b16 %v384
    %v425 = vunpack.c.l.b16 %v385
    %v426 = vunpack.c.l.b16 %v386
    %v427 = vunpack.c.l.b16 %v387
    %v428 = vunpack.c.l.b16 %v388
    %v429 = vunpack.c.l.b16 %v389
    %v430 = vunpack.c.l.b16 %v390
    %v431 = vunpack.c.l.b16 %v391
    %v432 = vunpack.c.l.b16 %v392
    %v433 = vunpack.c.l.b16 %v393
    %v434 = vunpack.c.l.b16 %v394
    %v435 = vpack.c.b16 %v420, %v419
    %v436 = vpack.c.b16 %v422, %v421
    %v437 = vpack.c.b16 %v424, %v423
    %v438 = vpack.c.b16 %v426, %v425
    %v439 = vpack.c.b16 %v428, %v427
    %v440 = vpack.c.b16 %v430, %v429
    %v441 = vpack.c.b16 %v432, %v431
    %v442 = vpack.c.b16 %v434, %v433
    %451 = vmatprep.subr.bf16.mxu0 0
    %452 = vmatpush1.bf16.msra.mxu0 %v435
    %453 = vmatprep.subr.bf16.mxu0 0
    %454 = vmatpush1.bf16.msra.mxu0 %v436
    %455 = vmatprep.subr.bf16.mxu0 0
    %456 = vmatpush1.bf16.msra.mxu0 %v437
    %457 = vmatprep.subr.bf16.mxu0 0
    %458 = vmatpush1.bf16.msra.mxu0 %v438
    %459 = vmatprep.subr.bf16.mxu0 0
    %460 = vmatpush1.bf16.msra.mxu0 %v439
    %461 = vmatprep.subr.bf16.mxu0 0
    %462 = vmatpush1.bf16.msra.mxu0 %v440
    %463 = vmatprep.subr.bf16.mxu0 0
    %464 = vmatpush1.bf16.msra.mxu0 %v441
    %465 = vmatprep.subr.bf16.mxu0 0
    %466 = vmatpush1.bf16.msra.mxu0 %v442
    %467 = vmatprep.subr.bf16.mxu0 0
    %468 = vmatpush1.bf16.msra.mxu0 0
    %469 = vmatprep.subr.bf16.mxu0 0
    %470 = vmatpush1.bf16.msra.mxu0 0
    %471 = vmatprep.subr.bf16.mxu0 0
    %472 = vmatpush1.bf16.msra.mxu0 0
    %473 = vmatprep.subr.bf16.mxu0 0
    %474 = vmatpush1.bf16.msra.mxu0 0
    %475 = vmatprep.subr.bf16.mxu0 0
    %476 = vmatpush1.bf16.msra.mxu0 0
    %477 = vmatprep.subr.bf16.mxu0 0
    %478 = vmatpush1.bf16.msra.mxu0 0
    %479 = vmatprep.subr.bf16.mxu0 0
    %480 = vmatpush1.bf16.msra.mxu0 0
    %481 = vmatprep.subr.bf16.mxu0 0
    %482 = vmatpush1.bf16.msra.mxu0 0
    %483 = vmatprep.mubr.bf16.mxu0 0
    %484 = vmatmul.mubr.bf16.gmra.mrb[0].mxu0 %v377
    %v485 = vpop.f32.mrb[0].mxu0
    %v486 = vadd.f32 %v401, %v485
    %v487 = vpop.f32.mrb[0].mxu0
    %v488 = vpop.f32.mrb[0].mxu0
    %v489 = vpop.f32.mrb[0].mxu0
    %490 = vdwg.mxu0
    %v491 = vmax.f32 %v486, 0.0
    %v492 = vpack.c.bf16 %v491, %v491
    %s493 = scalar_lea.vmem [#allocation2], 256
    %v494 = vld [vmem:[%s493] sm:$0xf]
    %v495 = vld [vmem:[%s493 + $0x4] sm:$0xf]
    %v496 = vld [vmem:[%s493 + $0x8] sm:$0xf]
    %v497 = vld [vmem:[%s493 + $0xc] sm:$0xf]
    %v498 = vld [vmem:[%s493 + $0x10] sm:$0xf]
    %v499 = vld [vmem:[%s493 + $0x14] sm:$0xf]
    %v500 = vld [vmem:[%s493 + $0x18] sm:$0xf]
    %v501 = vld [vmem:[%s493 + $0x1c] sm:$0xf]
    %v502 = vld [vmem:[%s493 + $0x20] sm:$0xf]
    %v503 = vld [vmem:[%s493 + $0x24] sm:$0xf]
    %v504 = vld [vmem:[%s493 + $0x28] sm:$0xf]
    %v505 = vld [vmem:[%s493 + $0x2c] sm:$0xf]
    %v506 = vld [vmem:[%s493 + $0x30] sm:$0xf]
    %v507 = vld [vmem:[%s493 + $0x34] sm:$0xf]
    %v508 = vld [vmem:[%s493 + $0x38] sm:$0xf]
    %v509 = vld [vmem:[%s493 + $0x3c] sm:$0xf]
    %s510 = scalar_lea.vmem %s2, 4
    %v511 = vld [vmem:[%s510] sm:$0x1]
    %v513 = vlaneseq
    %v514 = vshrl.u32 %v513, 7
    %v515 = vsub.s32 0, %v514
    %v516 = vrot.slane %v511, %v515
    %v534 = vunpack.c.l.b16 %v494
    %v535 = vunpack.c.l.b16 %v495
    %v536 = vunpack.c.l.b16 %v496
    %v537 = vunpack.c.l.b16 %v497
    %v538 = vunpack.c.l.b16 %v498
    %v539 = vunpack.c.l.b16 %v499
    %v540 = vunpack.c.l.b16 %v500
    %v541 = vunpack.c.l.b16 %v501
    %v542 = vunpack.c.l.b16 %v502
    %v543 = vunpack.c.l.b16 %v503
    %v544 = vunpack.c.l.b16 %v504
    %v545 = vunpack.c.l.b16 %v505
    %v546 = vunpack.c.l.b16 %v506
    %v547 = vunpack.c.l.b16 %v507
    %v548 = vunpack.c.l.b16 %v508
    %v549 = vunpack.c.l.b16 %v509
    %v550 = vpack.c.b16 %v535, %v534
    %v551 = vpack.c.b16 %v537, %v536
    %v552 = vpack.c.b16 %v539, %v538
    %v553 = vpack.c.b16 %v541, %v540
    %v554 = vpack.c.b16 %v543, %v542
    %v555 = vpack.c.b16 %v545, %v544
    %v556 = vpack.c.b16 %v547, %v546
    %v557 = vpack.c.b16 %v549, %v548
    %566 = vmatprep.subr.bf16.mxu0 0
    %567 = vmatpush1.bf16.msra.mxu0 %v550
    %568 = vmatprep.subr.bf16.mxu0 0
    %569 = vmatpush1.bf16.msra.mxu0 %v551
    %570 = vmatprep.subr.bf16.mxu0 0
    %571 = vmatpush1.bf16.msra.mxu0 %v552
    %572 = vmatprep.subr.bf16.mxu0 0
    %573 = vmatpush1.bf16.msra.mxu0 %v553
    %574 = vmatprep.subr.bf16.mxu0 0
    %575 = vmatpush1.bf16.msra.mxu0 %v554
    %576 = vmatprep.subr.bf16.mxu0 0
    %577 = vmatpush1.bf16.msra.mxu0 %v555
    %578 = vmatprep.subr.bf16.mxu0 0
    %579 = vmatpush1.bf16.msra.mxu0 %v556
    %580 = vmatprep.subr.bf16.mxu0 0
    %581 = vmatpush1.bf16.msra.mxu0 %v557
    %582 = vmatprep.subr.bf16.mxu0 0
    %583 = vmatpush1.bf16.msra.mxu0 0
    %584 = vmatprep.subr.bf16.mxu0 0
    %585 = vmatpush1.bf16.msra.mxu0 0
    %586 = vmatprep.subr.bf16.mxu0 0
    %587 = vmatpush1.bf16.msra.mxu0 0
    %588 = vmatprep.subr.bf16.mxu0 0
    %589 = vmatpush1.bf16.msra.mxu0 0
    %590 = vmatprep.subr.bf16.mxu0 0
    %591 = vmatpush1.bf16.msra.mxu0 0
    %592 = vmatprep.subr.bf16.mxu0 0
    %593 = vmatpush1.bf16.msra.mxu0 0
    %594 = vmatprep.subr.bf16.mxu0 0
    %595 = vmatpush1.bf16.msra.mxu0 0
    %596 = vmatprep.subr.bf16.mxu0 0
    %597 = vmatpush1.bf16.msra.mxu0 0
    %598 = vmatprep.mubr.bf16.mxu0 0
    %599 = vmatmul.mubr.bf16.gmra.mrb[0].mxu0 %v492
    %v600 = vpop.f32.mrb[0].mxu0
    %v601 = vadd.f32 %v516, %v600
    %v602 = vpop.f32.mrb[0].mxu0
    %v603 = vpop.f32.mrb[0].mxu0
    %v604 = vpop.f32.mrb[0].mxu0
    %605 = vdwg.mxu0
    %v606 = vmax.f32 %v601, 0.0
    %v607 = vpack.c.bf16 %v606, %v606
    %s608 = scalar_lea.vmem [#allocation2], 320
    %v609 = vld [vmem:[%s608] sm:$0xf]
    %v610 = vld [vmem:[%s608 + $0x4] sm:$0xf]
    %v611 = vld [vmem:[%s608 + $0x8] sm:$0xf]
    %v612 = vld [vmem:[%s608 + $0xc] sm:$0xf]
    %v613 = vld [vmem:[%s608 + $0x10] sm:$0xf]
    %v614 = vld [vmem:[%s608 + $0x14] sm:$0xf]
    %v615 = vld [vmem:[%s608 + $0x18] sm:$0xf]
    %v616 = vld [vmem:[%s608 + $0x1c] sm:$0xf]
    %v617 = vld [vmem:[%s608 + $0x20] sm:$0xf]
    %v618 = vld [vmem:[%s608 + $0x24] sm:$0xf]
    %v619 = vld [vmem:[%s608 + $0x28] sm:$0xf]
    %v620 = vld [vmem:[%s608 + $0x2c] sm:$0xf]
    %v621 = vld [vmem:[%s608 + $0x30] sm:$0xf]
    %v622 = vld [vmem:[%s608 + $0x34] sm:$0xf]
    %v623 = vld [vmem:[%s608 + $0x38] sm:$0xf]
    %v624 = vld [vmem:[%s608 + $0x3c] sm:$0xf]
    %s625 = scalar_lea.vmem %s2, 5
    %v626 = vld [vmem:[%s625] sm:$0x1]
    %v628 = vlaneseq
    %v629 = vshrl.u32 %v628, 7
    %v630 = vsub.s32 0, %v629
    %v631 = vrot.slane %v626, %v630
    %v649 = vunpack.c.l.b16 %v609
    %v650 = vunpack.c.l.b16 %v610
    %v651 = vunpack.c.l.b16 %v611
    %v652 = vunpack.c.l.b16 %v612
    %v653 = vunpack.c.l.b16 %v613
    %v654 = vunpack.c.l.b16 %v614
    %v655 = vunpack.c.l.b16 %v615
    %v656 = vunpack.c.l.b16 %v616
    %v657 = vunpack.c.l.b16 %v617
    %v658 = vunpack.c.l.b16 %v618
    %v659 = vunpack.c.l.b16 %v619
    %v660 = vunpack.c.l.b16 %v620
    %v661 = vunpack.c.l.b16 %v621
    %v662 = vunpack.c.l.b16 %v622
    %v663 = vunpack.c.l.b16 %v623
    %v664 = vunpack.c.l.b16 %v624
    %v665 = vpack.c.b16 %v650, %v649
    %v666 = vpack.c.b16 %v652, %v651
    %v667 = vpack.c.b16 %v654, %v653
    %v668 = vpack.c.b16 %v656, %v655
    %v669 = vpack.c.b16 %v658, %v657
    %v670 = vpack.c.b16 %v660, %v659
    %v671 = vpack.c.b16 %v662, %v661
    %v672 = vpack.c.b16 %v664, %v663
    %681 = vmatprep.subr.bf16.mxu0 0
    %682 = vmatpush1.bf16.msra.mxu0 %v665
    %683 = vmatprep.subr.bf16.mxu0 0
    %684 = vmatpush1.bf16.msra.mxu0 %v666
    %685 = vmatprep.subr.bf16.mxu0 0
    %686 = vmatpush1.bf16.msra.mxu0 %v667
    %687 = vmatprep.subr.bf16.mxu0 0
    %688 = vmatpush1.bf16.msra.mxu0 %v668
    %689 = vmatprep.subr.bf16.mxu0 0
    %690 = vmatpush1.bf16.msra.mxu0 %v669
    %691 = vmatprep.subr.bf16.mxu0 0
    %692 = vmatpush1.bf16.msra.mxu0 %v670
    %693 = vmatprep.subr.bf16.mxu0 0
    %694 = vmatpush1.bf16.msra.mxu0 %v671
    %695 = vmatprep.subr.bf16.mxu0 0
    %696 = vmatpush1.bf16.msra.mxu0 %v672
    %697 = vmatprep.subr.bf16.mxu0 0
    %698 = vmatpush1.bf16.msra.mxu0 0
    %699 = vmatprep.subr.bf16.mxu0 0
    %700 = vmatpush1.bf16.msra.mxu0 0
    %701 = vmatprep.subr.bf16.mxu0 0
    %702 = vmatpush1.bf16.msra.mxu0 0
    %703 = vmatprep.subr.bf16.mxu0 0
    %704 = vmatpush1.bf16.msra.mxu0 0
    %705 = vmatprep.subr.bf16.mxu0 0
    %706 = vmatpush1.bf16.msra.mxu0 0
    %707 = vmatprep.subr.bf16.mxu0 0
    %708 = vmatpush1.bf16.msra.mxu0 0
    %709 = vmatprep.subr.bf16.mxu0 0
    %710 = vmatpush1.bf16.msra.mxu0 0
    %711 = vmatprep.subr.bf16.mxu0 0
    %712 = vmatpush1.bf16.msra.mxu0 0
    %713 = vmatprep.mubr.bf16.mxu0 0
    %714 = vmatmul.mubr.bf16.gmra.mrb[0].mxu0 %v607
    %v715 = vpop.f32.mrb[0].mxu0
    %v716 = vadd.f32 %v631, %v715
    %v717 = vpop.f32.mrb[0].mxu0
    %v718 = vpop.f32.mrb[0].mxu0
    %v719 = vpop.f32.mrb[0].mxu0
    %720 = vdwg.mxu0
    %v721 = vmax.f32 %v716, 0.0
    %v722 = vpack.c.bf16 %v721, %v721
    %s723 = scalar_lea.vmem [#allocation2], 384
    %v724 = vld [vmem:[%s723] sm:$0xf]
    %v725 = vld [vmem:[%s723 + $0x4] sm:$0xf]
    %v726 = vld [vmem:[%s723 + $0x8] sm:$0xf]
    %v727 = vld [vmem:[%s723 + $0xc] sm:$0xf]
    %v728 = vld [vmem:[%s723 + $0x10] sm:$0xf]
    %v729 = vld [vmem:[%s723 + $0x14] sm:$0xf]
    %v730 = vld [vmem:[%s723 + $0x18] sm:$0xf]
    %v731 = vld [vmem:[%s723 + $0x1c] sm:$0xf]
    %v732 = vld [vmem:[%s723 + $0x20] sm:$0xf]
    %v733 = vld [vmem:[%s723 + $0x24] sm:$0xf]
    %v734 = vld [vmem:[%s723 + $0x28] sm:$0xf]
    %v735 = vld [vmem:[%s723 + $0x2c] sm:$0xf]
    %v736 = vld [vmem:[%s723 + $0x30] sm:$0xf]
    %v737 = vld [vmem:[%s723 + $0x34] sm:$0xf]
    %v738 = vld [vmem:[%s723 + $0x38] sm:$0xf]
    %v739 = vld [vmem:[%s723 + $0x3c] sm:$0xf]
    %s740 = scalar_lea.vmem %s2, 6
    %v741 = vld [vmem:[%s740] sm:$0x1]
    %v743 = vlaneseq
    %v744 = vshrl.u32 %v743, 7
    %v745 = vsub.s32 0, %v744
    %v746 = vrot.slane %v741, %v745
    %v764 = vunpack.c.l.b16 %v724
    %v765 = vunpack.c.l.b16 %v725
    %v766 = vunpack.c.l.b16 %v726
    %v767 = vunpack.c.l.b16 %v727
    %v768 = vunpack.c.l.b16 %v728
    %v769 = vunpack.c.l.b16 %v729
    %v770 = vunpack.c.l.b16 %v730
    %v771 = vunpack.c.l.b16 %v731
    %v772 = vunpack.c.l.b16 %v732
    %v773 = vunpack.c.l.b16 %v733
    %v774 = vunpack.c.l.b16 %v734
    %v775 = vunpack.c.l.b16 %v735
    %v776 = vunpack.c.l.b16 %v736
    %v777 = vunpack.c.l.b16 %v737
    %v778 = vunpack.c.l.b16 %v738
    %v779 = vunpack.c.l.b16 %v739
    %v780 = vpack.c.b16 %v765, %v764
    %v781 = vpack.c.b16 %v767, %v766
    %v782 = vpack.c.b16 %v769, %v768
    %v783 = vpack.c.b16 %v771, %v770
    %v784 = vpack.c.b16 %v773, %v772
    %v785 = vpack.c.b16 %v775, %v774
    %v786 = vpack.c.b16 %v777, %v776
    %v787 = vpack.c.b16 %v779, %v778
    %796 = vmatprep.subr.bf16.mxu0 0
    %797 = vmatpush1.bf16.msra.mxu0 %v780
    %798 = vmatprep.subr.bf16.mxu0 0
    %799 = vmatpush1.bf16.msra.mxu0 %v781
    %800 = vmatprep.subr.bf16.mxu0 0
    %801 = vmatpush1.bf16.msra.mxu0 %v782
    %802 = vmatprep.subr.bf16.mxu0 0
    %803 = vmatpush1.bf16.msra.mxu0 %v783
    %804 = vmatprep.subr.bf16.mxu0 0
    %805 = vmatpush1.bf16.msra.mxu0 %v784
    %806 = vmatprep.subr.bf16.mxu0 0
    %807 = vmatpush1.bf16.msra.mxu0 %v785
    %808 = vmatprep.subr.bf16.mxu0 0
    %809 = vmatpush1.bf16.msra.mxu0 %v786
    %810 = vmatprep.subr.bf16.mxu0 0
    %811 = vmatpush1.bf16.msra.mxu0 %v787
    %812 = vmatprep.subr.bf16.mxu0 0
    %813 = vmatpush1.bf16.msra.mxu0 0
    %814 = vmatprep.subr.bf16.mxu0 0
    %815 = vmatpush1.bf16.msra.mxu0 0
    %816 = vmatprep.subr.bf16.mxu0 0
    %817 = vmatpush1.bf16.msra.mxu0 0
    %818 = vmatprep.subr.bf16.mxu0 0
    %819 = vmatpush1.bf16.msra.mxu0 0
    %820 = vmatprep.subr.bf16.mxu0 0
    %821 = vmatpush1.bf16.msra.mxu0 0
    %822 = vmatprep.subr.bf16.mxu0 0
    %823 = vmatpush1.bf16.msra.mxu0 0
    %824 = vmatprep.subr.bf16.mxu0 0
    %825 = vmatpush1.bf16.msra.mxu0 0
    %826 = vmatprep.subr.bf16.mxu0 0
    %827 = vmatpush1.bf16.msra.mxu0 0
    %828 = vmatprep.mubr.bf16.mxu0 0
    %829 = vmatmul.mubr.bf16.gmra.mrb[0].mxu0 %v722
    %v830 = vpop.f32.mrb[0].mxu0
    %v831 = vadd.f32 %v746, %v830
    %v832 = vpop.f32.mrb[0].mxu0
    %v833 = vpop.f32.mrb[0].mxu0
    %v834 = vpop.f32.mrb[0].mxu0
    %835 = vdwg.mxu0
    %836 = vst [vmem:[%s3] sm:$0xff] %v831
    // Predicated region
    $region18: #{assembly_forward.1} parent=1 // pred_check
      _
    $region19: #{assembly_forward.1} parent=1 // pred_check_branch
      %838 = sbr.rel (0) target = $region21
    $region20: #{assembly_forward.1} parent=1 // pred_region
      _
    $region21: #{assembly_forward.1} parent=1 // pred_fallthru
      _
    // Predicated region
    $region22: #{assembly_forward.1} parent=1 // pred_check
      _
    $region23: #{assembly_forward.1} parent=1 // pred_check_branch
      %840 = sbr.rel (0) target = $region25
    $region24: #{assembly_forward.1} parent=1 // pred_region
      _
    $region25: #{assembly_forward.1} parent=1 // pred_fallthru
      _
    %841 = vsyncpa [#allocation3], 1

</llo_original>
